<compile_context>
chip_gen: v7x
topology: tpu7x:2x2x1
jax: 0.10.0
libtpu: 0.0.40
codegen_flags: <defaults>
</compile_context>

<pallas_src>
import functools

import jax
import jax.numpy as jnp
from jax import lax
from jax.experimental import pallas as pl
from jax.experimental.pallas import tpu as pltpu

_D = 256          # FC input features (fixed by the module)
_MAX_TILE = 2048  # rows (lanes) per grid step


def _round_up(a, m):
    return ((a + m - 1) // m) * m


def _choose_tile(n, max_tile):
    """Rows per grid step. Single block for small N; otherwise a multiple of 128
    (lane-dim requirement when tiling) capped so the grid has >= 2 steps."""
    if n <= 256:
        return n
    tile = _round_up(pl.cdiv(n, 2), 128)
    return max(128, min(tile, max_tile))


def _stack_rows(rows):
    """Pack a list of (1, T) rows into an (R, T) slab (sublane select)."""
    r, t = len(rows), rows[0].shape[-1]
    idx = lax.broadcasted_iota(jnp.int32, (r, t), 0)
    out = jnp.broadcast_to(rows[0], (r, t))
    for k in range(1, r):
        out = jnp.where(idx == k, rows[k], out)
    return out


def _logits_margin(x_ref, w_ref, b_ref):
    """Lane-dense 2-class head: logits (2, T), margin d = l1 - l0, probs."""
    logits = lax.dot_general(
        w_ref[...], x_ref[...], (((1,), (1,)), ((), ())),   # (2,256)x(T,256)^T
        preferred_element_type=jnp.float32) + b_ref[...]     # (2, T) f32
    d = logits[1:2, :] - logits[0:1, :]                       # (1, T)
    p1 = 1.0 / (1.0 + jnp.exp(-d))                            # softmax[:, 1]
    p0 = 1.0 - p1                                             # softmax[:, 0]
    return d, p0, p1


def _infer_kernel(x_ref, w_ref, b_ref, out_ref):
    _, p0, p1 = _logits_margin(x_ref, w_ref, b_ref)
    plab = jnp.round(p1)
    # OOB columns of the ragged last block are dropped by the masked store.
    out_ref[...] = _stack_rows([p0, p1, plab])


def _train_kernel(x_ref, w_ref, b_ref, lab_ref, out_ref, *, n, tile):
    d, p0, p1 = _logits_margin(x_ref, w_ref, b_ref)
    plab = jnp.round(p1)

    # Row-index validity mask for the ragged last block (do NOT trust OOB
    # reads of x / labels -- they are undefined).
    col = lax.broadcasted_iota(jnp.int32, (1, tile), 1) + pl.program_id(0) * tile
    valid = col < n

    lab = lab_ref[...]                                        # (1, T) int32
    # CrossEntropy, 2 classes: -log p_label == softplus(+/- d), stable form.
    z = jnp.where(lab == 1, -d, d)
    nll = jnp.maximum(z, 0.0) + jnp.log(1.0 + jnp.exp(-jnp.abs(z)))
    nll = jnp.where(valid, nll, 0.0)
    eq = jnp.where(valid & (plab == lab.astype(jnp.float32)), 1.0, 0.0)

    out_ref[...] = _stack_rows([p0, p1, plab, nll, eq])


def loss_av_forward(x, fc_weight, fc_bias, labels=None, *, max_tile=_MAX_TILE):
    """JAX wrapper reproducing LossAV.forward.

    x:         (N, 1, 256) float32 or bfloat16
    fc_weight: (2, 256)  (PyTorch nn.Linear weight layout)
    fc_bias:   (2,)
    labels:    optional (N,) int32
    """
    x2 = jnp.squeeze(x, axis=1)                               # (N, 256), keep dtype
    n = x2.shape[0]
    w = fc_weight.astype(x2.dtype)                            # (2, 256), lane-dense
    b = fc_bias.reshape(2, 1).astype(jnp.float32)             # (2, 1)

    tile = _choose_tile(n, max_tile)
    grid = (pl.cdiv(n, tile),)                                # ragged last block OK

    x_spec = pl.BlockSpec((tile, _D), lambda i: (i, 0))
    w_spec = pl.BlockSpec((2, _D), lambda i: (0, 0))          # resident across grid
    b_spec = pl.BlockSpec((2, 1), lambda i: (0, 0))

    cparams = pltpu.CompilerParams(
        dimension_semantics=("parallel",),                    # megacore on v7x
    )
    cost = pl.CostEstimate(
        flops=2 * n * _D * 2,
        transcendentals=2 * n,
        bytes_accessed=n * _D * x2.dtype.itemsize + n * 5 * 4 + (2 * _D + 2) * 4,
    )

    if labels is None:
        slab = pl.pallas_call(
            _infer_kernel,
            out_shape=jax.ShapeDtypeStruct((3, n), jnp.float32),
            grid=grid,
            in_specs=[x_spec, w_spec, b_spec],
            out_specs=pl.BlockSpec((3, tile), lambda i: (0, i)),
            compiler_params=cparams,
            cost_estimate=cost,
        )(x2, w, b)
        score = jnp.transpose(slab[0:2, :])                   # (N, 2)
        plabel = slab[2, :]                                   # (N,)
        return score, plabel

    lab = labels.astype(jnp.int32).reshape(1, n)              # lane-dense labels
    slab = pl.pallas_call(
        functools.partial(_train_kernel, n=n, tile=tile),
        out_shape=jax.ShapeDtypeStruct((5, n), jnp.float32),
        grid=grid,
        in_specs=[x_spec, w_spec, b_spec,
                  pl.BlockSpec((1, tile), lambda i: (0, i))],
        out_specs=pl.BlockSpec((5, tile), lambda i: (0, i)),
        compiler_params=cparams,
        cost_estimate=cost,
    )(x2, w, b, lab)

    score = jnp.transpose(slab[0:2, :])                       # (N, 2)
    plabel = slab[2, :]                                       # (N,)
    nloss = jnp.sum(slab[3, :]) / float(n)                    # CE mean reduction
    correct = jnp.sum(slab[4, :])
    return nloss, score, plabel, correct


def _reference(x, fc_weight, fc_bias, labels):
    """Pure-JAX reference."""
    x2 = jnp.squeeze(x, axis=1).astype(jnp.float32)
    logits = x2 @ fc_weight.astype(jnp.float32).T + fc_bias.astype(jnp.float32)
    probs = jax.nn.softmax(logits, axis=-1)
    plabel = jnp.round(probs)[:, 1]
    lp = jax.nn.log_softmax(logits, axis=-1)
    nloss = -jnp.mean(jnp.take_along_axis(lp, labels[:, None], axis=-1))
    correct = jnp.sum((plabel == labels.astype(plabel.dtype)).astype(jnp.float32))
    return nloss, probs, plabel, correct


def _check(x, fc_weight, fc_bias, labels, max_tile=_MAX_TILE, tag=""):
    n = x.shape[0]
    score_i, plabel_i = loss_av_forward(x, fc_weight, fc_bias, None,
                                        max_tile=max_tile)
    nloss, score, plabel, correct = loss_av_forward(x, fc_weight, fc_bias, labels,
                                                    max_tile=max_tile)
    jax.block_until_ready((score_i, plabel_i, nloss, score, plabel, correct))

    r_loss, r_score, r_plabel, r_correct = _reference(x, fc_weight, fc_bias, labels)
    assert jnp.allclose(nloss, r_loss, atol=1e-5), (tag, nloss, r_loss)
    assert jnp.allclose(score, r_score, atol=1e-5), tag
    assert jnp.allclose(plabel, r_plabel), tag
    assert jnp.allclose(correct, r_correct), tag
    assert jnp.allclose(score_i, r_score, atol=1e-5), tag
    assert jnp.allclose(plabel_i, r_plabel), tag
    assert score.shape == (n, 2) and plabel.shape == (n,), tag


if __name__ == "__main__":
    key = jax.random.PRNGKey(0)
    k_w, k_b, k1, k2, k3, k4, k5, k6 = jax.random.split(key, 8)

    D, C = 256, 2
    bound = 1.0 / (D ** 0.5)
    fc_weight = jax.random.uniform(k_w, (C, D), jnp.float32, -bound, bound)
    fc_bias = jax.random.uniform(k_b, (C,), jnp.float32, -bound, bound)

    # case 1: N = 8 (single block, multiple of 8)
    x1 = jax.random.normal(k1, (8, 1, D), dtype=jnp.float32)
    l1 = jax.random.randint(k2, (8,), 0, C, dtype=jnp.int32)
    _check(x1, fc_weight, fc_bias, l1, tag="n8")

    # case 2: N = 13 (single block, not a multiple of 8)
    x2 = jax.random.normal(k3, (13, 1, D), dtype=jnp.float32)
    l2 = jax.random.randint(k4, (13,), 0, C, dtype=jnp.int32)
    _check(x2, fc_weight, fc_bias, l2, tag="n13")

    # case 3: N = 300 with a small tile -> multi-block grid + ragged last block
    x3 = jax.random.normal(k5, (300, 1, D), dtype=jnp.float32)
    l3 = jax.random.randint(k6, (300,), 0, C, dtype=jnp.int32)
    _check(x3, fc_weight, fc_bias, l3, max_tile=128, tag="n300_tile128")

    print("KERNEL_OK")
</pallas_src>

<mosaic_0001>
module attributes {stable_mosaic.version = 11 : i64} {
  func.func @_infer_kernel(%arg0: i32, %arg1: memref<8x256xf32, #tpu.memory_space<vmem>>, %arg2: memref<2x256xf32, #tpu.memory_space<vmem>>, %arg3: memref<2x1xf32, #tpu.memory_space<vmem>>, %arg4: memref<3x8xf32, #tpu.memory_space<vmem>>) attributes {dimension_semantics = [#tpu.dimension_semantics<parallel>], iteration_bounds = array<i64: 1>, scalar_prefetch = 0 : i64, scratch_operands = 0 : i64, tpu.core_type = #tpu.core_type<tc>, window_params = [{transform_indices = @transform_0, window_bounds = array<i64: 8, 256>}, {pipeline_mode = #tpu.pipeline_mode<synchronous>, transform_indices = @transform_1, window_bounds = array<i64: 2, 256>}, {pipeline_mode = #tpu.pipeline_mode<synchronous>, transform_indices = @transform_2, window_bounds = array<i64: 2, 1>}, {transform_indices = @transform_3, window_bounds = array<i64: 3, 8>}]} {
    %c0 = arith.constant 0 : index
    %c0_0 = arith.constant 0 : index
    %0 = vector.load %arg2[%c0, %c0_0] : memref<2x256xf32, #tpu.memory_space<vmem>>, vector<2x256xf32>
    %c0_1 = arith.constant 0 : index
    %c0_2 = arith.constant 0 : index
    %1 = vector.load %arg1[%c0_1, %c0_2] : memref<8x256xf32, #tpu.memory_space<vmem>>, vector<8x256xf32>
    %cst = arith.constant dense<0.000000e+00> : vector<2x8xf32>
    %2 = tpu.matmul %0, %1, %cst {dimension_numbers = #tpu.dot_dimension_numbers<[1], [1], [0], [0], [0, 0, 1, 0], [], []>} : vector<2x256xf32>, vector<8x256xf32>, vector<2x8xf32> -> vector<2x8xf32>
    %c0_3 = arith.constant 0 : index
    %c0_4 = arith.constant 0 : index
    %3 = vector.load %arg3[%c0_3, %c0_4] : memref<2x1xf32, #tpu.memory_space<vmem>>, vector<2x1xf32>
    %4 = vector.broadcast %3 : vector<2x1xf32> to vector<2x8xf32>
    %5 = arith.addf %2, %4 : vector<2x8xf32>
    %6 = vector.extract_strided_slice %5 {offsets = [1, 0], sizes = [1, 8], strides = [1, 1]} : vector<2x8xf32> to vector<1x8xf32>
    %7 = vector.extract_strided_slice %5 {offsets = [0, 0], sizes = [1, 8], strides = [1, 1]} : vector<2x8xf32> to vector<1x8xf32>
    %8 = arith.subf %6, %7 : vector<1x8xf32>
    %cst_5 = arith.constant 0.000000e+00 : f32
    %9 = vector.broadcast %cst_5 : f32 to vector<1x8xf32>
    %10 = arith.subf %9, %8 : vector<1x8xf32>
    %11 = math.exp %10 : vector<1x8xf32>
    %cst_6 = arith.constant 1.000000e+00 : f32
    %12 = vector.broadcast %cst_6 : f32 to vector<1x8xf32>
    %13 = arith.addf %12, %11 : vector<1x8xf32>
    %cst_7 = arith.constant 1.000000e+00 : f32
    %14 = vector.broadcast %cst_7 : f32 to vector<1x8xf32>
    %15 = arith.divf %14, %13 : vector<1x8xf32>
    %cst_8 = arith.constant 1.000000e+00 : f32
    %16 = vector.broadcast %cst_8 : f32 to vector<1x8xf32>
    %17 = arith.subf %16, %15 : vector<1x8xf32>
    %18 = math.roundeven %15 : vector<1x8xf32>
    %19 = tpu.iota {dimensions = array<i32: 0>} : vector<3x8xi32>
    %20 = vector.shape_cast %17 : vector<1x8xf32> to vector<1x8xf32>
    %21 = vector.broadcast %20 : vector<1x8xf32> to vector<3x8xf32>
    %c1_i32 = arith.constant 1 : i32
    %22 = vector.broadcast %c1_i32 : i32 to vector<3x8xi32>
    %23 = arith.cmpi eq, %19, %22 : vector<3x8xi32>
    %24 = vector.shape_cast %15 : vector<1x8xf32> to vector<1x8xf32>
    %25 = vector.broadcast %24 : vector<1x8xf32> to vector<3x8xf32>
    %26 = arith.select %23, %25, %21 : vector<3x8xi1>, vector<3x8xf32>
    %c2_i32 = arith.constant 2 : i32
    %27 = vector.broadcast %c2_i32 : i32 to vector<3x8xi32>
    %28 = arith.cmpi eq, %19, %27 : vector<3x8xi32>
    %29 = vector.shape_cast %18 : vector<1x8xf32> to vector<1x8xf32>
    %30 = vector.broadcast %29 : vector<1x8xf32> to vector<3x8xf32>
    %31 = arith.select %28, %30, %26 : vector<3x8xi1>, vector<3x8xf32>
    %c0_9 = arith.constant 0 : index
    %c0_10 = arith.constant 0 : index
    %32 = vector.load %arg4[%c0_9, %c0_10] : memref<3x8xf32, #tpu.memory_space<vmem>>, vector<3x8xf32>
    tpu.vector_store %arg4[%c0_9, %c0_10], %31 {strides = array<i32>} : memref<3x8xf32, #tpu.memory_space<vmem>>, vector<3x8xf32>,
    return
  }
  func.func @transform_0(%arg0: i32) -> (i32, i32) {
    %c0_i32 = arith.constant 0 : i32
    %c0_i32_0 = arith.constant 0 : i32
    return %arg0, %c0_i32 : i32, i32
  }
  func.func @transform_1(%arg0: i32) -> (i32, i32) {
    %c0_i32 = arith.constant 0 : i32
    %c0_i32_0 = arith.constant 0 : i32
    %c0_i32_1 = arith.constant 0 : i32
    return %c0_i32, %c0_i32_0 : i32, i32
  }
  func.func @transform_2(%arg0: i32) -> (i32, i32) {
    %c0_i32 = arith.constant 0 : i32
    %c0_i32_0 = arith.constant 0 : i32
    %c0_i32_1 = arith.constant 0 : i32
    return %c0_i32, %c0_i32_0 : i32, i32
  }
  func.func @transform_3(%arg0: i32) -> (i32, i32) {
    %c0_i32 = arith.constant 0 : i32
    %c0_i32_0 = arith.constant 0 : i32
    return %c0_i32, %arg0 : i32, i32
  }
}

</mosaic_0001>

<llo_original>
// kernel: tpu_custom_call.1
$region0: #{tpu_custom_call.1}
  #allocation0 [shape = 'u32[]', space=smem, size = 0x4, offset = 0x4, fixed_abs, tag = 'smem constant byte address 0x4 - core index']
  #allocation1 [shape = 'u32[144,128]{1,0:T(1,128)}', space=vmem, size = 0x12000, scoped, tag = 'internal scratch']
  %s0 = inlined_call_operand.hbm [shape: f32[8,256], index: 0, kind: input, shape index: {}]
  %s1 = inlined_call_operand.vmem [shape: f32[2,256], index: 1, kind: input, shape index: {}]
  %s2 = inlined_call_operand.vmem [shape: f32[2,1], index: 2, kind: input, shape index: {}]
  %s3 = inlined_call_operand.hbm [shape: f32[3,8], index: 3, kind: output, shape index: {}]
  %s4 = sld [smem:[#allocation0]]
  $region26: #{tpu_custom_call.1} parent=0
    _
  %s6 = ssub.s32 1, %s4
  %s7 = scalar_select 0, %s6, %s4
  $region1: #{tpu_custom_call.1} parent=0
    #allocation2 [shape = 'u8[8192]{0}', space=vmem, size = 0x2000, scoped, tag = 'input window, operand 0, single buffered']
    #allocation3 [shape = 's32[1]{0}', space=sflag, size = 0x4, scoped, tag = 'scoped memory for tpu_custom_call.1']
    #allocation4 [shape = 's32[1]{0}', space=sflag, size = 0x4, scoped, tag = 'scoped memory for tpu_custom_call.1']
    #allocation5 [shape = 'u8[2048]{0}', space=vmem, size = 0x800, scoped, tag = 'output window, operand 0, single buffered']
    %8 = vsyncpa [#allocation3], 0
    %9 = vsyncpa [#allocation4], 0
    // Predicated region
    $region2: #{tpu_custom_call.1} parent=1 // pred_check
      _
    $region3: #{tpu_custom_call.1} parent=1 // pred_check_branch
      %11 = sbr.rel (0) target = $region5
    $region4: #{tpu_custom_call.1} parent=1 // pred_region
      %s13 = ssub.s32 256, 256
      %14 = vsyncadd [#allocation3], %s13
      %s16 = sshll.u32 [#allocation2], 4
      %s17 = int_to_ptr.vmem [resolvable:$true] %s16
      %19 = dma.hbm_to_vmem [thread:$0]  %s0, 256, %s17, [#allocation3]
    $region5: #{tpu_custom_call.1} parent=1 // pred_fallthru
      _
    // Predicated region
    $region6: #{tpu_custom_call.1} parent=1 // pred_check
      _
    $region7: #{tpu_custom_call.1} parent=1 // pred_check_branch
      %21 = sbr.rel (0) target = $region9
    $region8: #{tpu_custom_call.1} parent=1 // pred_region
      _
    $region9: #{tpu_custom_call.1} parent=1 // pred_fallthru
      _
    // Predicated region
    $region10: #{tpu_custom_call.1} parent=1 // pred_check
      _
    $region11: #{tpu_custom_call.1} parent=1 // pred_check_branch
      %23 = sbr.rel (0) target = $region13
    $region12: #{tpu_custom_call.1} parent=1 // pred_region
      _
    $region13: #{tpu_custom_call.1} parent=1 // pred_fallthru
      _
    // Predicated region
    $region14: #{tpu_custom_call.1} parent=1 // pred_check
      _
    $region15: #{tpu_custom_call.1} parent=1 // pred_check_branch
      %25 = sbr.rel (0) target = $region17
    $region16: #{tpu_custom_call.1} parent=1 // pred_region
      %26 = dma.done [#allocation3], 256
    $region17: #{tpu_custom_call.1} parent=1 // pred_fallthru
      _
    %v27 = vld [vmem:[%s1] sm:$0xf]
    %v28 = vld [vmem:[#allocation2] sm:$0xff]
    %v29 = vld [vmem:[#allocation2 + $0x8] sm:$0xff]
    %v30 = vld [vmem:[%s2] sm:$0x3]
    %32 = vset.pattern.permute.xlu0 0
    %33 = vperm.xlu0 %32, %v30
    %v34 = vpop.permute.xlu0 %33
    %v38 = vunpack.c.l.s4 1983009808
    %v39 = vunpack.c.0.s8 %v38
    %v40 = vlaneseq
    %v41 = vshrl.u32 %v40, 7
    %v42 = vsub.s32 %v39, %v41
    %v43 = vrot.slane %v27, %v42
    %v44 = vcombine.high %v43, %v43
    %47 = vmatprep.subr.mxu0 %v29
    %48 = vmatpush1.xpose.msra.mxu0 %v28
    %49 = vmatprep.subr.mxu0 0.0
    %50 = vmatpush1.xpose.msra.mxu0 0.0
    %51 = vmatprep.subr.mxu0 0.0
    %52 = vmatpush1.xpose.msra.mxu0 0.0
    %53 = vmatprep.subr.mxu0 0.0
    %54 = vmatpush1.xpose.msra.mxu0 0.0
    %55 = vmatprep.subr.mxu0 0.0
    %56 = vmatpush1.xpose.msra.mxu0 0.0
    %57 = vmatprep.subr.mxu0 0.0
    %58 = vmatpush1.xpose.msra.mxu0 0.0
    %59 = vmatprep.subr.mxu0 0.0
    %60 = vmatpush1.xpose.msra.mxu0 0.0
    %61 = vmatprep.subr.mxu0 0.0
    %62 = vmatpush1.xpose.msra.mxu0 0.0
    %63 = vmatprep.subr.mxu0 0.0
    %64 = vmatpush1.xpose.msra.mxu0 0.0
    %65 = vmatprep.subr.mxu0 0.0
    %66 = vmatpush1.xpose.msra.mxu0 0.0
    %67 = vmatprep.subr.mxu0 0.0
    %68 = vmatpush1.xpose.msra.mxu0 0.0
    %69 = vmatprep.subr.mxu0 0.0
    %70 = vmatpush1.xpose.msra.mxu0 0.0
    %71 = vmatprep.subr.mxu0 0.0
    %72 = vmatpush1.xpose.msra.mxu0 0.0
    %73 = vmatprep.subr.mxu0 0.0
    %74 = vmatpush1.xpose.msra.mxu0 0.0
    %75 = vmatprep.subr.mxu0 0.0
    %76 = vmatpush1.xpose.msra.mxu0 0.0
    %77 = vmatprep.subr.mxu0 0.0
    %78 = vmatpush1.xpose.msra.mxu0 0.0
    %79 = vmatprep.subr.mxu0 0.0
    %80 = vmatpush1.xpose.msra.mxu0 0.0
    %81 = vmatprep.subr.mxu0 0.0
    %82 = vmatpush1.xpose.msra.mxu0 0.0
    %83 = vmatprep.subr.mxu0 0.0
    %84 = vmatpush1.xpose.msra.mxu0 0.0
    %85 = vmatprep.subr.mxu0 0.0
    %86 = vmatpush1.xpose.msra.mxu0 0.0
    %87 = vmatprep.subr.mxu0 0.0
    %88 = vmatpush1.xpose.msra.mxu0 0.0
    %89 = vmatprep.subr.mxu0 0.0
    %90 = vmatpush1.xpose.msra.mxu0 0.0
    %91 = vmatprep.subr.mxu0 0.0
    %92 = vmatpush1.xpose.msra.mxu0 0.0
    %93 = vmatprep.subr.mxu0 0.0
    %94 = vmatpush1.xpose.msra.mxu0 0.0
    %95 = vmatprep.subr.mxu0 0.0
    %96 = vmatpush1.xpose.msra.mxu0 0.0
    %97 = vmatprep.subr.mxu0 0.0
    %98 = vmatpush1.xpose.msra.mxu0 0.0
    %99 = vmatprep.subr.mxu0 0.0
    %100 = vmatpush1.xpose.msra.mxu0 0.0
    %101 = vmatprep.subr.mxu0 0.0
    %102 = vmatpush1.xpose.msra.mxu0 0.0
    %103 = vmatprep.subr.mxu0 0.0
    %104 = vmatpush1.xpose.msra.mxu0 0.0
    %105 = vmatprep.subr.mxu0 0.0
    %106 = vmatpush1.xpose.msra.mxu0 0.0
    %107 = vmatprep.subr.mxu0 0.0
    %108 = vmatpush1.xpose.msra.mxu0 0.0
    %109 = vmatprep.subr.mxu0 0.0
    %110 = vmatpush1.xpose.msra.mxu0 0.0
    %111 = vmatprep.mubr.f32.mxu0 %v44
    %112 = vmatmul.mubr.f32.gmra.mrb[0].mxu0 %v43
    %v113 = vpop.f32.mrb[0].mxu0
    %v114 = vadd.f32 %v34, %v113
    %v115 = vpop.f32.mrb[0].mxu0
    %116 = vdwg.mxu0
    %v118 = vrot.slane %v114, 7
    %v120 = vsub.f32 %v114, %v118
    %v121 = vsub.f32 0.0, %v120
    %v122 = vmul.f32 %v121, 1.442695
    %v123 = vpow.pop %v122
    %v124 = vadd.f32 %v123, 1.0
    %v125 = vrcp.pop %v124
    %v126 = vmul.f32 1.0, %v125
    %v127 = vsub.f32 1.0, %v126
    %v128 = vround.ne.pseudo %v126
    %v129 = vlaneseq
    %v130 = vshrl.u32 %v129, 7
    %v131 = vlaneseq
    %v132 = vshrl.u32 %v131, 7
    %v133 = vsub.s32 1, %v132
    %v134 = vrot.slane %v127, %v133
    %vm135 = vcmp.eq.s32.totalorder %v130, 1
    %v136 = vlaneseq
    %v137 = vshrl.u32 %v136, 7
    %v138 = vsub.s32 1, %v137
    %v139 = vrot.slane %v126, %v138
    %v140 = vsel %vm135, %v139, %v134
    %vm141 = vcmp.eq.s32.totalorder %v130, 2
    %v142 = vlaneseq
    %v143 = vshrl.u32 %v142, 7
    %v144 = vsub.s32 1, %v143
    %v145 = vrot.slane %v128, %v144
    %v146 = vsel %vm141, %v145, %v140
    %vm147 = vcmask 59392
    %148 = vst.msk [vmem:[#allocation5] sm:$0x7] %vm147, %v146
    // Predicated region
    $region18: #{tpu_custom_call.1} parent=1 // pred_check
      _
    $region19: #{tpu_custom_call.1} parent=1 // pred_check_branch
      %150 = sbr.rel (0) target = $region21
    $region20: #{tpu_custom_call.1} parent=1 // pred_region
      %s152 = ssub.s32 64, 64
      %153 = vsyncadd [#allocation4], %s152
      %s155 = sshll.u32 [#allocation5], 4
      %s156 = int_to_ptr.vmem [resolvable:$true] %s155
      %158 = dma.vmem_to_hbm [thread:$0]  %s156, 64, %s3, [#allocation4]
    $region21: #{tpu_custom_call.1} parent=1 // pred_fallthru
      _
    // Predicated region
    $region22: #{tpu_custom_call.1} parent=1 // pred_check
      _
    $region23: #{tpu_custom_call.1} parent=1 // pred_check_branch
      %160 = sbr.rel (0) target = $region25
    $region24: #{tpu_custom_call.1} parent=1 // pred_region
      %161 = dma.done [#allocation4], 64
    $region25: #{tpu_custom_call.1} parent=1 // pred_fallthru
      _
    %162 = vsyncpa [#allocation3], 1
    %163 = vsyncpa [#allocation4], 1

</llo_original>
